<compile_context>
chip_gen: v7x
topology: tpu7x:2x2x1
jax: 0.10.0
libtpu: 0.0.40
codegen_flags: <defaults>
</compile_context>

<pallas_src>
import jax
import jax.numpy as jnp
from jax.experimental import pallas as pl
from jax.experimental.pallas import tpu as pltpu

C_IN = 4
C_HID = 32
K1 = 5
K2 = 5
K3 = 2
PAD = 2


def _make_kernel(TB, P1, P2):
    M1 = TB * P1          # flattened pool1 / conv2 rows per block
    M2 = TB * P2          # flattened pool2 / conv3 rows per block
    inv_P1 = 1.0 / P1

    def kernel(x1_ref, w1_ref, b1_ref, w2_ref, b2_ref, w3_ref, b3_ref,
               out_ref, h2_s):
        # ---- conv1 (merged even/odd phases, single K=20 matmul) + ReLU + pool1 ----
        # Rows [0, M1) of the input block are the even-phase im2col rows, rows
        # [M1, 2*M1) the odd-phase rows; MaxPool1d(2) is the max of the halves.
        h1 = jnp.dot(x1_ref[...], w1_ref[...],
                     preferred_element_type=jnp.float32) + b1_ref[...]
        p1 = jnp.maximum(jnp.maximum(h1[:M1, :], h1[M1:, :]), 0.0)   # (M1,32) f32

        # ---- conv2 tap-validity mask, generated in-kernel (no HBM mask) ----
        # pos = row % P1, computed in f32 (exact here: row/P1 magnitudes are far
        # below f32's integer range and the +0.5 keeps floor() off integer
        # rounding boundaries).  Tap at offset d is valid iff 0 <= pos+d < P1,
        # which also zeroes the rows that pltpu.roll wraps at the block edges.
        row = jax.lax.broadcasted_iota(jnp.int32, (M1, C_HID), 0).astype(jnp.float32)
        pos = row - jnp.floor((row + 0.5) * inv_P1) * jnp.float32(P1)

        # ---- conv2 (single K=160 im2col matmul) + ReLU ----
        # Taps are XLU rolls of the in-register p1 (jnp.roll convention:
        # roll(x, s)[i] = x[i - s], so offset d uses shift (-d) % M1).
        cols = []
        for k in range(K2):
            d = k - PAD
            tap = p1 if d == 0 else pltpu.roll(p1, shift=(-d) % M1, axis=0)
            if d < 0:
                tap = jnp.where(pos >= (-d) - 0.5, tap, 0.0)
            elif d > 0:
                tap = jnp.where(pos <= (P1 - 1 - d) + 0.5, tap, 0.0)
            cols.append(tap.astype(jnp.bfloat16))
        x2 = jnp.concatenate(cols, axis=-1)                          # (M1,160) bf16
        h2 = jnp.dot(x2, w2_ref[...],
                     preferred_element_type=jnp.float32) + b2_ref[...]
        h2_s[...] = jnp.maximum(h2, 0.0)

        # ---- MaxPool1d(5): strided reads (flattened; valid since P1 % 5 == 0) ----
        p2 = h2_s[pl.ds(0, M2, stride=5), :]
        for j in range(1, 5):
            p2 = jnp.maximum(p2, h2_s[pl.ds(j, M2, stride=5), :])

        # ---- conv3 (k=2, no pad, single K=64 im2col matmul) ----
        # Row i needs p2[i] and p2[i+1]; the +1 shift is an XLU roll.  The last
        # row of each element (and the roll-wrapped last row of the block) is
        # cross-element garbage and is dropped by the wrapper slice [:, :LO, :]
        # -- that slice must never be removed.
        p2n = pltpu.roll(p2, shift=M2 - 1, axis=0)                   # p2n[i]=p2[i+1]
        x3 = jnp.concatenate([p2.astype(jnp.bfloat16),
                              p2n.astype(jnp.bfloat16)], axis=-1)    # (M2,64) bf16
        out = jnp.dot(x3, w3_ref[...],
                      preferred_element_type=jnp.float32) + b3_ref[...]
        out_ref[...] = out.astype(out_ref.dtype)

    return kernel


def _per_elem_vmem_bytes(P1, P2):
    """Padding-aware per-batch-element VMEM estimate.

    Lanes pad to 128; sublanes pad to 8 rows (f32) / 16 rows (bf16).
    """
    LANE = 128
    rpad = lambda n, m: ((n + m - 1) // m) * m
    x1_in = 2 * rpad(2 * P1, 16) * LANE * 2           # conv1 im2col block, bf16, 2x buffered
    h2_scr = rpad(P1, 8) * LANE * 4                   # conv2-output scratch, f32
    out_blk = 2 * rpad(P2, 8) * LANE * 4              # output block, f32, 2x buffered
    live = (2 * P1 * LANE * 4                         # h1
            + 2 * P1 * LANE * 4                       # p1 + pos/mask
            + 5 * P1 * LANE * 2                       # bf16 taps
            + P1 * rpad(K2 * C_HID, LANE) * 2         # x2 concat
            + P1 * LANE * 4                           # h2
            + 4 * rpad(P2, 8) * LANE * 4)             # p2 / p2n / x3 / out
    return x1_in + h2_scr + out_blk + live


def _vmem_budget_bytes():
    cap = 64 << 20
    try:
        info = pltpu.get_tpu_info()
        cap = int(getattr(info, "vmem_capacity_bytes", cap))
    except Exception:
        pass
    # ~25% headroom under physical VMEM (v5e/v6e: 128 MiB -> ~96 MiB budget,
    # v7x: 64 MiB -> ~48 MiB), never below the conservative 32 MiB default.
    return max(32 << 20, (cap * 3) // 4)


def _pick_tb(B, P1, P2, budget_bytes):
    """Largest divisor of B that fits the VMEM budget, preferring >=4 grid
    steps (>=2 per TensorCore on v7x) and sublane-aligned blocks."""
    per_elem = _per_elem_vmem_bytes(P1, P2)
    fixed = 1 << 20                                    # weights / biases / slack
    cap = max(1, (budget_bytes - fixed) // max(per_elem, 1))
    divs = [d for d in range(1, B + 1) if B % d == 0 and d <= cap] or [1]

    def score(d):
        g = B // d
        return (g >= 4,                # >= 2 steps per TensorCore on v7x
                g >= 2,                # keep the pipeline double-buffered
                (d * P1) % 8 == 0,     # sublane-aligned phase slices / rolls
                d)                     # then the largest block that fits
    return max(divs, key=score)


@jax.jit
def onehot_forward(x, w1, b1, w2, b2, w3, b3):
    """x: (B, L, 4) float32 -> (B, 32, Lout) float32 (PyTorch NCL output)."""
    B, L, cin = x.shape
    assert cin == C_IN
    # Static shape requirements for the flattened pooling used by this kernel.
    assert L % 10 == 0 and L >= 20, (
        "onehot_forward requires L %% 10 == 0 and L >= 20 (got L=%d)" % L)
    P1 = L // 2            # after MaxPool1d(2)
    P2 = P1 // 5           # after MaxPool1d(5)
    LO = P2 - 1            # after Conv1d(k=2, no pad)

    budget = _vmem_budget_bytes()
    TB = _pick_tb(B, P1, P2, budget)
    G = B // TB
    M1 = TB * P1
    M2 = TB * P2

    # ---- glue (plain JAX, fused by XLA): conv1 im2col, merged even/odd phases ----
    xp = jnp.pad(x, ((0, 0), (PAD, PAD), (0, 0)))                         # (B, L+4, 4)
    im2 = jnp.concatenate([xp[:, k:k + L, :] for k in range(K1)], axis=-1)   # (B, L, 20)
    x1e = im2[:, 0::2, :].reshape(G, M1, K1 * C_IN)
    x1o = im2[:, 1::2, :].reshape(G, M1, K1 * C_IN)
    x1 = jnp.concatenate([x1e, x1o], axis=1).astype(jnp.bfloat16)         # (G, 2*M1, 20)

    w1f = w1.reshape(K1 * C_IN, C_HID).astype(jnp.bfloat16)
    w2f = w2.reshape(K2 * C_HID, C_HID).astype(jnp.bfloat16)
    w3f = w3.reshape(K3 * C_HID, C_HID).astype(jnp.bfloat16)
    b1r = b1.reshape(1, C_HID).astype(jnp.float32)
    b2r = b2.reshape(1, C_HID).astype(jnp.float32)
    b3r = b3.reshape(1, C_HID).astype(jnp.float32)

    kernel = _make_kernel(TB, P1, P2)
    out = pl.pallas_call(
        kernel,
        out_shape=jax.ShapeDtypeStruct((G, M2, C_HID), jnp.float32),
        grid=(G,),
        in_specs=[
            pl.BlockSpec((None, 2 * M1, K1 * C_IN), lambda g: (g, 0, 0)),
            pl.BlockSpec((K1 * C_IN, C_HID), lambda g: (0, 0)),
            pl.BlockSpec((1, C_HID), lambda g: (0, 0)),
            pl.BlockSpec((K2 * C_HID, C_HID), lambda g: (0, 0)),
            pl.BlockSpec((1, C_HID), lambda g: (0, 0)),
            pl.BlockSpec((K3 * C_HID, C_HID), lambda g: (0, 0)),
            pl.BlockSpec((1, C_HID), lambda g: (0, 0)),
        ],
        out_specs=pl.BlockSpec((None, M2, C_HID), lambda g: (g, 0, 0)),
        scratch_shapes=[
            pltpu.VMEM((M1, C_HID), jnp.float32),     # conv2 out (pool2 source)
        ],
        compiler_params=pltpu.CompilerParams(
            dimension_semantics=("parallel",),
            vmem_limit_bytes=int(budget)),
    )(x1, w1f, b1r, w2f, b2r, w3f, b3r)

    # IMPORTANT: the kernel emits P2 rows per element; row P2-1 of each element
    # is cross-element (or block-wrapped) garbage from the conv3 roll and MUST
    # be dropped here.  Then back to PyTorch's NCL layout.
    out = out.reshape(B, P2, C_HID)[:, :LO, :]
    return jnp.transpose(out, (0, 2, 1))                        # (B, 32, LO)


def _reference_forward(x, w1, b1, w2, b2, w3, b3):
    """Pure-JAX reference mirroring the PyTorch module (eval mode)."""
    def conv1d(y_ncl, w_kio, b, pad):
        w_oik = jnp.transpose(w_kio, (2, 1, 0))                 # (O, I, K)
        out = jax.lax.conv_general_dilated(
            y_ncl, w_oik, window_strides=(1,), padding=[(pad, pad)],
            dimension_numbers=("NCH", "OIH", "NCH"))
        return out + b[None, :, None]

    def maxpool(y_ncl, k):
        B, C, L = y_ncl.shape
        Lt = (L // k) * k
        return jnp.max(y_ncl[:, :, :Lt].reshape(B, C, L // k, k), axis=-1)

    y = jnp.transpose(x, (0, 2, 1))                             # (B, 4, L)
    y = jax.nn.relu(conv1d(y, w1, b1, PAD))
    y = maxpool(y, 2)
    y = jax.nn.relu(conv1d(y, w2, b2, PAD))
    y = maxpool(y, 5)
    y = conv1d(y, w3, b3, 0)
    return y


if __name__ == "__main__":
    B, L = 8, 40   # 40 -> conv1:40 -> pool1:20 -> conv2:20 -> pool2:4 -> conv3:3
    key = jax.random.PRNGKey(0)
    kx, k1, k2, k3, k4, k5, k6 = jax.random.split(key, 7)

    x = jax.random.normal(kx, (B, L, C_IN), dtype=jnp.float32)

    # Deterministic synthetic parameters (PyTorch-ish uniform scale 1/sqrt(fan_in*k)).
    def uinit(k, shape, fan_in):
        bound = 1.0 / jnp.sqrt(jnp.float32(fan_in))
        return jax.random.uniform(k, shape, jnp.float32, -bound, bound)

    w1 = uinit(k1, (K1, C_IN, C_HID), C_IN * K1)
    b1 = uinit(k2, (C_HID,), C_IN * K1)
    w2 = uinit(k3, (K2, C_HID, C_HID), C_HID * K2)
    b2 = uinit(k4, (C_HID,), C_HID * K2)
    w3 = uinit(k5, (K3, C_HID, C_HID), C_HID * K3)
    b3 = uinit(k6, (C_HID,), C_HID * K3)

    out = onehot_forward(x, w1, b1, w2, b2, w3, b3)
    out = jax.block_until_ready(out)

    ref = _reference_forward(x, w1, b1, w2, b2, w3, b3)
    assert out.shape == ref.shape == (B, C_HID, 3), (out.shape, ref.shape)
    max_err = float(jnp.max(jnp.abs(out - ref)))
    # bf16 matmul inputs with f32 accumulation -> small tolerance vs f32 reference.
    assert jnp.allclose(out, ref, rtol=3e-2, atol=3e-2), max_err

    print("KERNEL_OK")
</pallas_src>

<mosaic_0001>
module attributes {stable_mosaic.version = 11 : i64} {
  func.func @kernel(%arg0: i32, %arg1: memref<1x80x20xbf16, #tpu.memory_space<vmem>>, %arg2: memref<20x32xbf16, #tpu.memory_space<vmem>>, %arg3: memref<1x32xf32, #tpu.memory_space<vmem>>, %arg4: memref<160x32xbf16, #tpu.memory_space<vmem>>, %arg5: memref<1x32xf32, #tpu.memory_space<vmem>>, %arg6: memref<64x32xbf16, #tpu.memory_space<vmem>>, %arg7: memref<1x32xf32, #tpu.memory_space<vmem>>, %arg8: memref<1x8x32xf32, #tpu.memory_space<vmem>>, %arg9: memref<40x32xf32, #tpu.memory_space<vmem>>) attributes {dimension_semantics = [#tpu.dimension_semantics<parallel>], iteration_bounds = array<i64: 4>, scalar_prefetch = 0 : i64, scratch_operands = 1 : i64, tpu.core_type = #tpu.core_type<tc>, window_params = [{transform_indices = @transform_0, window_bounds = array<i64: 1, 80, 20>}, {pipeline_mode = #tpu.pipeline_mode<synchronous>, transform_indices = @transform_1, window_bounds = array<i64: 20, 32>}, {pipeline_mode = #tpu.pipeline_mode<synchronous>, transform_indices = @transform_2, window_bounds = array<i64: 1, 32>}, {pipeline_mode = #tpu.pipeline_mode<synchronous>, transform_indices = @transform_3, window_bounds = array<i64: 160, 32>}, {pipeline_mode = #tpu.pipeline_mode<synchronous>, transform_indices = @transform_4, window_bounds = array<i64: 1, 32>}, {pipeline_mode = #tpu.pipeline_mode<synchronous>, transform_indices = @transform_5, window_bounds = array<i64: 64, 32>}, {pipeline_mode = #tpu.pipeline_mode<synchronous>, transform_indices = @transform_6, window_bounds = array<i64: 1, 32>}, {transform_indices = @transform_7, window_bounds = array<i64: 1, 8, 32>}]} {
    %c0 = arith.constant 0 : index
    %c0_0 = arith.constant 0 : index
    %c0_1 = arith.constant 0 : index
    %0 = vector.load %arg1[%c0, %c0_0, %c0_1] : memref<1x80x20xbf16, #tpu.memory_space<vmem>>, vector<1x80x20xbf16>
    %1 = vector.shape_cast %0 : vector<1x80x20xbf16> to vector<80x20xbf16>
    %c0_2 = arith.constant 0 : index
    %c0_3 = arith.constant 0 : index
    %2 = vector.load %arg2[%c0_2, %c0_3] : memref<20x32xbf16, #tpu.memory_space<vmem>>, vector<20x32xbf16>
    %cst = arith.constant dense<0.000000e+00> : vector<80x32xf32>
    %3 = tpu.matmul %1, %2, %cst {dimension_numbers = #tpu.dot_dimension_numbers<[1], [0], [0], [1], [0, 0, 1, 1], [], []>} : vector<80x20xbf16>, vector<20x32xbf16>, vector<80x32xf32> -> vector<80x32xf32>
    %c0_4 = arith.constant 0 : index
    %c0_5 = arith.constant 0 : index
    %4 = vector.load %arg3[%c0_4, %c0_5] : memref<1x32xf32, #tpu.memory_space<vmem>>, vector<1x32xf32>
    %5 = vector.broadcast %4 : vector<1x32xf32> to vector<80x32xf32>
    %6 = arith.addf %3, %5 : vector<80x32xf32>
    %7 = vector.extract_strided_slice %6 {offsets = [0, 0], sizes = [40, 32], strides = [1, 1]} : vector<80x32xf32> to vector<40x32xf32>
    %8 = vector.extract_strided_slice %6 {offsets = [40, 0], sizes = [40, 32], strides = [1, 1]} : vector<80x32xf32> to vector<40x32xf32>
    %9 = arith.maximumf %7, %8 : vector<40x32xf32>
    %cst_6 = arith.constant 0.000000e+00 : f32
    %10 = vector.broadcast %cst_6 : f32 to vector<40x32xf32>
    %11 = arith.maximumf %9, %10 : vector<40x32xf32>
    %12 = tpu.iota {dimensions = array<i32: 0>} : vector<40x32xi32>
    %13 = arith.sitofp %12 : vector<40x32xi32> to vector<40x32xf32>
    %cst_7 = arith.constant 5.000000e-01 : f32
    %14 = vector.broadcast %cst_7 : f32 to vector<40x32xf32>
    %15 = arith.addf %13, %14 : vector<40x32xf32>
    %cst_8 = arith.constant 5.000000e-02 : f32
    %16 = vector.broadcast %cst_8 : f32 to vector<40x32xf32>
    %17 = arith.mulf %15, %16 : vector<40x32xf32>
    %18 = math.floor %17 : vector<40x32xf32>
    %cst_9 = arith.constant 2.000000e+01 : f32
    %19 = vector.broadcast %cst_9 : f32 to vector<40x32xf32>
    %20 = arith.mulf %18, %19 : vector<40x32xf32>
    %21 = arith.subf %13, %20 : vector<40x32xf32>
    %c2_i32 = arith.constant 2 : i32
    %22 = tpu.dynamic_rotate %11 by %c2_i32 dim 0 : vector<40x32xf32>, i32 -> vector<40x32xf32>
    %cst_10 = arith.constant 1.500000e+00 : f32
    %23 = vector.broadcast %cst_10 : f32 to vector<40x32xf32>
    %24 = arith.cmpf oge, %21, %23 : vector<40x32xf32>
    %cst_11 = arith.constant 0.000000e+00 : f32
    %25 = vector.broadcast %cst_11 : f32 to vector<40x32xf32>
    %26 = arith.select %24, %22, %25 : vector<40x32xi1>, vector<40x32xf32>
    %27 = arith.truncf %26 : vector<40x32xf32> to vector<40x32xbf16>
    %c1_i32 = arith.constant 1 : i32
    %28 = tpu.dynamic_rotate %11 by %c1_i32 dim 0 : vector<40x32xf32>, i32 -> vector<40x32xf32>
    %cst_12 = arith.constant 5.000000e-01 : f32
    %29 = vector.broadcast %cst_12 : f32 to vector<40x32xf32>
    %30 = arith.cmpf oge, %21, %29 : vector<40x32xf32>
    %cst_13 = arith.constant 0.000000e+00 : f32
    %31 = vector.broadcast %cst_13 : f32 to vector<40x32xf32>
    %32 = arith.select %30, %28, %31 : vector<40x32xi1>, vector<40x32xf32>
    %33 = arith.truncf %32 : vector<40x32xf32> to vector<40x32xbf16>
    %34 = arith.truncf %11 : vector<40x32xf32> to vector<40x32xbf16>
    %c39_i32 = arith.constant 39 : i32
    %35 = tpu.dynamic_rotate %11 by %c39_i32 dim 0 : vector<40x32xf32>, i32 -> vector<40x32xf32>
    %cst_14 = arith.constant 1.850000e+01 : f32
    %36 = vector.broadcast %cst_14 : f32 to vector<40x32xf32>
    %37 = arith.cmpf ole, %21, %36 : vector<40x32xf32>
    %cst_15 = arith.constant 0.000000e+00 : f32
    %38 = vector.broadcast %cst_15 : f32 to vector<40x32xf32>
    %39 = arith.select %37, %35, %38 : vector<40x32xi1>, vector<40x32xf32>
    %40 = arith.truncf %39 : vector<40x32xf32> to vector<40x32xbf16>
    %c38_i32 = arith.constant 38 : i32
    %41 = tpu.dynamic_rotate %11 by %c38_i32 dim 0 : vector<40x32xf32>, i32 -> vector<40x32xf32>
    %cst_16 = arith.constant 1.750000e+01 : f32
    %42 = vector.broadcast %cst_16 : f32 to vector<40x32xf32>
    %43 = arith.cmpf ole, %21, %42 : vector<40x32xf32>
    %cst_17 = arith.constant 0.000000e+00 : f32
    %44 = vector.broadcast %cst_17 : f32 to vector<40x32xf32>
    %45 = arith.select %43, %41, %44 : vector<40x32xi1>, vector<40x32xf32>
    %46 = arith.truncf %45 : vector<40x32xf32> to vector<40x32xbf16>
    %47 = tpu.concatenate %27, %33, %34, %40, %46 in 1 : vector<40x32xbf16>, vector<40x32xbf16>, vector<40x32xbf16>, vector<40x32xbf16>, vector<40x32xbf16> -> vector<40x160xbf16>
    %c0_18 = arith.constant 0 : index
    %c0_19 = arith.constant 0 : index
    %48 = vector.load %arg4[%c0_18, %c0_19] : memref<160x32xbf16, #tpu.memory_space<vmem>>, vector<160x32xbf16>
    %cst_20 = arith.constant dense<0.000000e+00> : vector<40x32xf32>
    %49 = tpu.matmul %47, %48, %cst_20 {dimension_numbers = #tpu.dot_dimension_numbers<[1], [0], [0], [1], [0, 0, 1, 1], [], []>} : vector<40x160xbf16>, vector<160x32xbf16>, vector<40x32xf32> -> vector<40x32xf32>
    %c0_21 = arith.constant 0 : index
    %c0_22 = arith.constant 0 : index
    %50 = vector.load %arg5[%c0_21, %c0_22] : memref<1x32xf32, #tpu.memory_space<vmem>>, vector<1x32xf32>
    %51 = vector.broadcast %50 : vector<1x32xf32> to vector<40x32xf32>
    %52 = arith.addf %49, %51 : vector<40x32xf32>
    %cst_23 = arith.constant 0.000000e+00 : f32
    %53 = vector.broadcast %cst_23 : f32 to vector<40x32xf32>
    %54 = arith.maximumf %52, %53 : vector<40x32xf32>
    %c0_24 = arith.constant 0 : index
    %c0_25 = arith.constant 0 : index
    %55 = vector.load %arg9[%c0_24, %c0_25] : memref<40x32xf32, #tpu.memory_space<vmem>>, vector<40x32xf32>
    tpu.vector_store %arg9[%c0_24, %c0_25], %54 {strides = array<i32>} : memref<40x32xf32, #tpu.memory_space<vmem>>, vector<40x32xf32>,
    %c0_26 = arith.constant 0 : index
    %c0_27 = arith.constant 0 : index
    %56 = tpu.strided_load %arg9[%c0_26, %c0_27] {strides = array<i32: 5, 1>} : memref<40x32xf32, #tpu.memory_space<vmem>>, vector<8x32xf32>
    %c1 = arith.constant 1 : index
    %c0_28 = arith.constant 0 : index
    %57 = tpu.strided_load %arg9[%c1, %c0_28] {strides = array<i32: 5, 1>} : memref<40x32xf32, #tpu.memory_space<vmem>>, vector<8x32xf32>
    %58 = arith.maximumf %56, %57 : vector<8x32xf32>
    %c2 = arith.constant 2 : index
    %c0_29 = arith.constant 0 : index
    %59 = tpu.strided_load %arg9[%c2, %c0_29] {strides = array<i32: 5, 1>} : memref<40x32xf32, #tpu.memory_space<vmem>>, vector<8x32xf32>
    %60 = arith.maximumf %58, %59 : vector<8x32xf32>
    %c3 = arith.constant 3 : index
    %c0_30 = arith.constant 0 : index
    %61 = tpu.strided_load %arg9[%c3, %c0_30] {strides = array<i32: 5, 1>} : memref<40x32xf32, #tpu.memory_space<vmem>>, vector<8x32xf32>
    %62 = arith.maximumf %60, %61 : vector<8x32xf32>
    %c4 = arith.constant 4 : index
    %c0_31 = arith.constant 0 : index
    %63 = tpu.strided_load %arg9[%c4, %c0_31] {strides = array<i32: 5, 1>} : memref<40x32xf32, #tpu.memory_space<vmem>>, vector<8x32xf32>
    %64 = arith.maximumf %62, %63 : vector<8x32xf32>
    %c7_i32 = arith.constant 7 : i32
    %65 = tpu.dynamic_rotate %64 by %c7_i32 dim 0 : vector<8x32xf32>, i32 -> vector<8x32xf32>
    %66 = arith.truncf %64 : vector<8x32xf32> to vector<8x32xbf16>
    %67 = arith.truncf %65 : vector<8x32xf32> to vector<8x32xbf16>
    %68 = tpu.concatenate %66, %67 in 1 : vector<8x32xbf16>, vector<8x32xbf16> -> vector<8x64xbf16>
    %c0_32 = arith.constant 0 : index
    %c0_33 = arith.constant 0 : index
    %69 = vector.load %arg6[%c0_32, %c0_33] : memref<64x32xbf16, #tpu.memory_space<vmem>>, vector<64x32xbf16>
    %cst_34 = arith.constant dense<0.000000e+00> : vector<8x32xf32>
    %70 = tpu.matmul %68, %69, %cst_34 {dimension_numbers = #tpu.dot_dimension_numbers<[1], [0], [0], [1], [0, 0, 1, 1], [], []>} : vector<8x64xbf16>, vector<64x32xbf16>, vector<8x32xf32> -> vector<8x32xf32>
    %c0_35 = arith.constant 0 : index
    %c0_36 = arith.constant 0 : index
    %71 = vector.load %arg7[%c0_35, %c0_36] : memref<1x32xf32, #tpu.memory_space<vmem>>, vector<1x32xf32>
    %72 = vector.broadcast %71 : vector<1x32xf32> to vector<8x32xf32>
    %73 = arith.addf %70, %72 : vector<8x32xf32>
    %c0_37 = arith.constant 0 : index
    %c0_38 = arith.constant 0 : index
    %c0_39 = arith.constant 0 : index
    %74 = vector.load %arg8[%c0_37, %c0_38, %c0_39] : memref<1x8x32xf32, #tpu.memory_space<vmem>>, vector<1x8x32xf32>
    %75 = vector.shape_cast %74 : vector<1x8x32xf32> to vector<8x32xf32>
    %76 = vector.shape_cast %73 : vector<8x32xf32> to vector<1x8x32xf32>
    tpu.vector_store %arg8[%c0_37, %c0_38, %c0_39], %76 {strides = array<i32>} : memref<1x8x32xf32, #tpu.memory_space<vmem>>, vector<1x8x32xf32>,
    return
  }
  func.func @transform_0(%arg0: i32) -> (i32, i32, i32) {
    %c0_i32 = arith.constant 0 : i32
    %c0_i32_0 = arith.constant 0 : i32
    %c0_i32_1 = arith.constant 0 : i32
    return %arg0, %c0_i32, %c0_i32_0 : i32, i32, i32
  }
  func.func @transform_1(%arg0: i32) -> (i32, i32) {
    %c0_i32 = arith.constant 0 : i32
    %c0_i32_0 = arith.constant 0 : i32
    %c0_i32_1 = arith.constant 0 : i32
    return %c0_i32, %c0_i32_0 : i32, i32
  }
  func.func @transform_2(%arg0: i32) -> (i32, i32) {
    %c0_i32 = arith.constant 0 : i32
    %c0_i32_0 = arith.constant 0 : i32
    %c0_i32_1 = arith.constant 0 : i32
    return %c0_i32, %c0_i32_0 : i32, i32
  }
  func.func @transform_3(%arg0: i32) -> (i32, i32) {
    %c0_i32 = arith.constant 0 : i32
    %c0_i32_0 = arith.constant 0 : i32
    %c0_i32_1 = arith.constant 0 : i32
    return %c0_i32, %c0_i32_0 : i32, i32
  }
  func.func @transform_4(%arg0: i32) -> (i32, i32) {
    %c0_i32 = arith.constant 0 : i32
    %c0_i32_0 = arith.constant 0 : i32
    %c0_i32_1 = arith.constant 0 : i32
    return %c0_i32, %c0_i32_0 : i32, i32
  }
  func.func @transform_5(%arg0: i32) -> (i32, i32) {
    %c0_i32 = arith.constant 0 : i32
    %c0_i32_0 = arith.constant 0 : i32
    %c0_i32_1 = arith.constant 0 : i32
    return %c0_i32, %c0_i32_0 : i32, i32
  }
  func.func @transform_6(%arg0: i32) -> (i32, i32) {
    %c0_i32 = arith.constant 0 : i32
    %c0_i32_0 = arith.constant 0 : i32
    %c0_i32_1 = arith.constant 0 : i32
    return %c0_i32, %c0_i32_0 : i32, i32
  }
  func.func @transform_7(%arg0: i32) -> (i32, i32, i32) {
    %c0_i32 = arith.constant 0 : i32
    %c0_i32_0 = arith.constant 0 : i32
    %c0_i32_1 = arith.constant 0 : i32
    return %arg0, %c0_i32, %c0_i32_0 : i32, i32, i32
  }
}

</mosaic_0001>

<llo_original>
// kernel: onehot_forward.1
$region0: #{onehot_forward.1}
  #allocation0 [shape = 'u32[]', space=smem, size = 0x4, offset = 0x4, fixed_abs, tag = 'smem constant byte address 0x4 - core index']
  #allocation1 [shape = 'u32[144,128]{1,0:T(1,128)}', space=vmem, size = 0x12000, scoped, tag = 'internal scratch']
  #allocation2 [shape = 'f32[40,32]{1,0:T(8,128)}', space=vmem, size = 0x5000, scoped, tag = 'scratch operand']
  %s0 = inlined_call_operand.vmem [shape: bf16[4,80,20], index: 0, kind: input, shape index: {}]
  %s1 = inlined_call_operand.vmem [shape: bf16[20,32], index: 1, kind: input, shape index: {}]
  %s2 = inlined_call_operand.vmem [shape: f32[1,32], index: 2, kind: input, shape index: {}]
  %s3 = inlined_call_operand.vmem [shape: bf16[160,32], index: 3, kind: input, shape index: {}]
  %s4 = inlined_call_operand.vmem [shape: f32[1,32], index: 4, kind: input, shape index: {}]
  %s5 = inlined_call_operand.vmem [shape: bf16[64,32], index: 5, kind: input, shape index: {}]
  %s6 = inlined_call_operand.vmem [shape: f32[1,32], index: 6, kind: input, shape index: {}]
  %s7 = inlined_call_operand.vmem [shape: f32[4,8,32], index: 7, kind: output, shape index: {}]
  %s8 = sld [smem:[#allocation0]]
  $region61: #{onehot_forward.1} parent=0
    _
  %s10 = ssub.s32 1, %s8
  %s11 = scalar_select 0, %s10, %s8
  loop: start=0, step=1, limit=6
  $region2: #{onehot_forward.1} parent=0 // loop_pre_header
    _
  $region3: #{onehot_forward.1} parent=0 // loop_header
    %s13 = sphi 0, %s17
    %p14 = scmp.ge.s32.totalorder %s13, 6
    %s23 = sphi 0, %s25
    %s26 = sphi 0, %s23
    %s27 = sphi 0, %s26
    %s43 = sphi 0, %s27
    %s47 = sphi 0, %s47
    %s49 = sphi 0, %s47
    %s50 = sphi 0, %s49
    %s64 = sphi 0, %s50
    %s68 = sphi 0, %s68
    %s70 = sphi 0, %s68
    %s71 = sphi 0, %s70
    %s85 = sphi 0, %s71
    %s89 = sphi 0, %s89
    %s91 = sphi 0, %s89
    %s92 = sphi 0, %s91
    %s106 = sphi 0, %s92
    %s110 = sphi 0, %s110
    %s112 = sphi 0, %s110
    %s113 = sphi 0, %s112
    %s127 = sphi 0, %s113
    %s131 = sphi 0, %s131
    %s133 = sphi 0, %s131
    %s134 = sphi 0, %s133
    %s148 = sphi 0, %s134
    %s152 = sphi 0, %s152
    %s154 = sphi 0, %s152
    %s155 = sphi 0, %s154
    %s169 = sphi 0, %s155
    %s175 = sphi 0, %s177
    %s178 = sphi 0, %s175
    %s179 = sphi 0, %s178
    %s195 = sphi 0, %s179
  $region4: #{onehot_forward.1} parent=0 // loop_header_branch
    %16 = sbr.rel (%p14) target = $region8
  $region5: #{onehot_forward.1} parent=0 // loop_body
    %s18 = ssub.s32 %s13, 1
    %s19 = ssub.s32 %s13, 2
    %s20 = sadd.s32 %s13, 1
    %s21 = ssub.s32 %s13, %s20
    %p22 = scmp.eq.s32.totalorder %s21, 0
    %s24 = sadd.s32 %s23, 1
    %s25 = scalar_select %p22, %s23, %s24
    %p28 = pneg %p22
    %p29 = scmp.eq.s32.totalorder %s13, 3
    %p30 = por %p28, %p29
    %p31 = scmp.ne.s32.totalorder %s23, %s26
    %p32 = scmp.eq.s32.totalorder %s13, 0
    %p33 = por %p31, %p32
    %p34 = scmp.ne.s32.totalorder %s23, %s26
    %p35 = scmp.eq.s32.totalorder %s18, 3
    %p36 = por %p34, %p35
    %p37 = scmp.ne.s32.totalorder %s26, %s27
    %p38 = scmp.eq.s32.totalorder %s18, 0
    %p39 = por %p37, %p38
    %p40 = scmp.ne.s32.totalorder %s26, %s27
    %p41 = scmp.eq.s32.totalorder %s19, 3
    %p42 = por %p40, %p41
    %p44 = scmp.ne.s32.totalorder %s27, %s43
    %p45 = scmp.eq.s32.totalorder %s19, 0
    %p46 = por %p44, %p45
    %s48 = sadd.s32 %s47, 1
    %p51 = scmp.eq.s32.totalorder %s13, 3
    %p52 = scmp.ne.s32.totalorder %s47, %s49
    %p53 = scmp.eq.s32.totalorder %s13, 0
    %p54 = por %p52, %p53
    %p55 = scmp.ne.s32.totalorder %s47, %s49
    %p56 = scmp.eq.s32.totalorder %s18, 3
    %p57 = por %p55, %p56
    %p58 = scmp.ne.s32.totalorder %s49, %s50
    %p59 = scmp.eq.s32.totalorder %s18, 0
    %p60 = por %p58, %p59
    %p61 = scmp.ne.s32.totalorder %s49, %s50
    %p62 = scmp.eq.s32.totalorder %s19, 3
    %p63 = por %p61, %p62
    %p65 = scmp.ne.s32.totalorder %s50, %s64
    %p66 = scmp.eq.s32.totalorder %s19, 0
    %p67 = por %p65, %p66
    %s69 = sadd.s32 %s68, 1
    %p72 = scmp.eq.s32.totalorder %s13, 3
    %p73 = scmp.ne.s32.totalorder %s68, %s70
    %p74 = scmp.eq.s32.totalorder %s13, 0
    %p75 = por %p73, %p74
    %p76 = scmp.ne.s32.totalorder %s68, %s70
    %p77 = scmp.eq.s32.totalorder %s18, 3
    %p78 = por %p76, %p77
    %p79 = scmp.ne.s32.totalorder %s70, %s71
    %p80 = scmp.eq.s32.totalorder %s18, 0
    %p81 = por %p79, %p80
    %p82 = scmp.ne.s32.totalorder %s70, %s71
    %p83 = scmp.eq.s32.totalorder %s19, 3
    %p84 = por %p82, %p83
    %p86 = scmp.ne.s32.totalorder %s71, %s85
    %p87 = scmp.eq.s32.totalorder %s19, 0
    %p88 = por %p86, %p87
    %s90 = sadd.s32 %s89, 1
    %p93 = scmp.eq.s32.totalorder %s13, 3
    %p94 = scmp.ne.s32.totalorder %s89, %s91
    %p95 = scmp.eq.s32.totalorder %s13, 0
    %p96 = por %p94, %p95
    %p97 = scmp.ne.s32.totalorder %s89, %s91
    %p98 = scmp.eq.s32.totalorder %s18, 3
    %p99 = por %p97, %p98
    %p100 = scmp.ne.s32.totalorder %s91, %s92
    %p101 = scmp.eq.s32.totalorder %s18, 0
    %p102 = por %p100, %p101
    %p103 = scmp.ne.s32.totalorder %s91, %s92
    %p104 = scmp.eq.s32.totalorder %s19, 3
    %p105 = por %p103, %p104
    %p107 = scmp.ne.s32.totalorder %s92, %s106
    %p108 = scmp.eq.s32.totalorder %s19, 0
    %p109 = por %p107, %p108
    %s111 = sadd.s32 %s110, 1
    %p114 = scmp.eq.s32.totalorder %s13, 3
    %p115 = scmp.ne.s32.totalorder %s110, %s112
    %p116 = scmp.eq.s32.totalorder %s13, 0
    %p117 = por %p115, %p116
    %p118 = scmp.ne.s32.totalorder %s110, %s112
    %p119 = scmp.eq.s32.totalorder %s18, 3
    %p120 = por %p118, %p119
    %p121 = scmp.ne.s32.totalorder %s112, %s113
    %p122 = scmp.eq.s32.totalorder %s18, 0
    %p123 = por %p121, %p122
    %p124 = scmp.ne.s32.totalorder %s112, %s113
    %p125 = scmp.eq.s32.totalorder %s19, 3
    %p126 = por %p124, %p125
    %p128 = scmp.ne.s32.totalorder %s113, %s127
    %p129 = scmp.eq.s32.totalorder %s19, 0
    %p130 = por %p128, %p129
    %s132 = sadd.s32 %s131, 1
    %p135 = scmp.eq.s32.totalorder %s13, 3
    %p136 = scmp.ne.s32.totalorder %s131, %s133
    %p137 = scmp.eq.s32.totalorder %s13, 0
    %p138 = por %p136, %p137
    %p139 = scmp.ne.s32.totalorder %s131, %s133
    %p140 = scmp.eq.s32.totalorder %s18, 3
    %p141 = por %p139, %p140
    %p142 = scmp.ne.s32.totalorder %s133, %s134
    %p143 = scmp.eq.s32.totalorder %s18, 0
    %p144 = por %p142, %p143
    %p145 = scmp.ne.s32.totalorder %s133, %s134
    %p146 = scmp.eq.s32.totalorder %s19, 3
    %p147 = por %p145, %p146
    %p149 = scmp.ne.s32.totalorder %s134, %s148
    %p150 = scmp.eq.s32.totalorder %s19, 0
    %p151 = por %p149, %p150
    %s153 = sadd.s32 %s152, 1
    %p156 = scmp.eq.s32.totalorder %s13, 3
    %p157 = scmp.ne.s32.totalorder %s152, %s154
    %p158 = scmp.eq.s32.totalorder %s13, 0
    %p159 = por %p157, %p158
    %p160 = scmp.ne.s32.totalorder %s152, %s154
    %p161 = scmp.eq.s32.totalorder %s18, 3
    %p162 = por %p160, %p161
    %p163 = scmp.ne.s32.totalorder %s154, %s155
    %p164 = scmp.eq.s32.totalorder %s18, 0
    %p165 = por %p163, %p164
    %p166 = scmp.ne.s32.totalorder %s154, %s155
    %p167 = scmp.eq.s32.totalorder %s19, 3
    %p168 = por %p166, %p167
    %p170 = scmp.ne.s32.totalorder %s155, %s169
    %p171 = scmp.eq.s32.totalorder %s19, 0
    %p172 = por %p170, %p171
    %s173 = ssub.s32 %s13, %s20
    %p174 = scmp.eq.s32.totalorder %s173, 0
    %s176 = sadd.s32 %s175, 1
    %s177 = scalar_select %p174, %s175, %s176
    %p180 = pneg %p174
    %p181 = scmp.eq.s32.totalorder %s13, 3
    %p182 = por %p180, %p181
    %p183 = scmp.ne.s32.totalorder %s175, %s178
    %p184 = scmp.eq.s32.totalorder %s13, 0
    %p185 = por %p183, %p184
    %p186 = scmp.ne.s32.totalorder %s175, %s178
    %p187 = scmp.eq.s32.totalorder %s18, 3
    %p188 = por %p186, %p187
    %p189 = scmp.ne.s32.totalorder %s178, %s179
    %p190 = scmp.eq.s32.totalorder %s18, 0
    %p191 = por %p189, %p190
    %p192 = scmp.ne.s32.totalorder %s178, %s179
    %p193 = scmp.eq.s32.totalorder %s19, 3
    %p194 = por %p192, %p193
    %p196 = scmp.ne.s32.totalorder %s179, %s195
    %p197 = scmp.eq.s32.totalorder %s19, 0
    %p198 = por %p196, %p197
    %p199 = scmp.le.s32.totalorder 1, %s13
    %p200 = scmp.lt.s32.totalorder %s13, 5
    %p201 = pnand %p199, %p200
    %p202 = pneg %p201
    // Predicated region
    $region9: #{onehot_forward.1} parent=5 // pred_check
      _
    $region10: #{onehot_forward.1} parent=5 // pred_check_branch
      %204 = sbr.rel (%p201) target = $region12
    $region11: #{onehot_forward.1} parent=5 // pred_region
      %s205 = ssub.s32 %s13, 1
      // Predicated region
      $region13: #{onehot_forward.1} parent=11 // pred_check
        %p206 = pneg %p60
      $region14: #{onehot_forward.1} parent=11 // pred_check_branch
        %208 = sbr.rel (%p206) target = $region16
      $region15: #{onehot_forward.1} parent=11 // pred_region
        _
      $region16: #{onehot_forward.1} parent=11 // pred_fallthru
        _
      // Predicated region
      $region17: #{onehot_forward.1} parent=11 // pred_check
        %p209 = pneg %p81
      $region18: #{onehot_forward.1} parent=11 // pred_check_branch
        %211 = sbr.rel (%p209) target = $region20
      $region19: #{onehot_forward.1} parent=11 // pred_region
        _
      $region20: #{onehot_forward.1} parent=11 // pred_fallthru
        _
      // Predicated region
      $region21: #{onehot_forward.1} parent=11 // pred_check
        %p212 = pneg %p102
      $region22: #{onehot_forward.1} parent=11 // pred_check_branch
        %214 = sbr.rel (%p212) target = $region24
      $region23: #{onehot_forward.1} parent=11 // pred_region
        _
      $region24: #{onehot_forward.1} parent=11 // pred_fallthru
        _
      // Predicated region
      $region25: #{onehot_forward.1} parent=11 // pred_check
        %p215 = pneg %p123
      $region26: #{onehot_forward.1} parent=11 // pred_check_branch
        %217 = sbr.rel (%p215) target = $region28
      $region27: #{onehot_forward.1} parent=11 // pred_region
        _
      $region28: #{onehot_forward.1} parent=11 // pred_fallthru
        _
      // Predicated region
      $region29: #{onehot_forward.1} parent=11 // pred_check
        %p218 = pneg %p144
      $region30: #{onehot_forward.1} parent=11 // pred_check_branch
        %220 = sbr.rel (%p218) target = $region32
      $region31: #{onehot_forward.1} parent=11 // pred_region
        _
      $region32: #{onehot_forward.1} parent=11 // pred_fallthru
        _
      // Predicated region
      $region33: #{onehot_forward.1} parent=11 // pred_check
        %p221 = pneg %p165
      $region34: #{onehot_forward.1} parent=11 // pred_check_branch
        %223 = sbr.rel (%p221) target = $region36
      $region35: #{onehot_forward.1} parent=11 // pred_region
        _
      $region36: #{onehot_forward.1} parent=11 // pred_fallthru
        _
    $region12: #{onehot_forward.1} parent=5 // pred_fallthru
      _
    %p224 = scmp.lt.s32.totalorder %s13, 4
    // Predicated region
    $region37: #{onehot_forward.1} parent=5 // pred_check
      %p225 = pneg %p224
    $region38: #{onehot_forward.1} parent=5 // pred_check_branch
      %227 = sbr.rel (%p225) target = $region40
    $region39: #{onehot_forward.1} parent=5 // pred_region
      // Predicated region
      $region41: #{onehot_forward.1} parent=39 // pred_check
        %p228 = pneg %p33
      $region42: #{onehot_forward.1} parent=39 // pred_check_branch
        %230 = sbr.rel (%p228) target = $region44
      $region43: #{onehot_forward.1} parent=39 // pred_region
        %p231 = scmp.lt.s32.totalorder %s13, 3
        %s232 = scalar_select %p231, %s13, 3
        %s233 = smul.addr %s232, 10
        %s234 = smul.addr %s233, 4
        %s235 = scalar_lea.vmem %s0, %s234
      $region44: #{onehot_forward.1} parent=39 // pred_fallthru
        _
    $region40: #{onehot_forward.1} parent=5 // pred_fallthru
      _
    %p236 = scmp.le.s32.totalorder 1, %s13
    %p237 = scmp.lt.s32.totalorder %s13, 5
    %p238 = pnand %p236, %p237
    %p239 = pneg %p238
    // Predicated region
    $region45: #{onehot_forward.1} parent=5 // pred_check
      _
    $region46: #{onehot_forward.1} parent=5 // pred_check_branch
      %241 = sbr.rel (%p238) target = $region48
    $region47: #{onehot_forward.1} parent=5 // pred_region
      %s242 = ssub.s32 %s13, 1
      %p243 = scmp.lt.s32.totalorder %s18, 3
      %s244 = scalar_select %p243, %s18, 3
      %s245 = smul.addr %s244, 10
      %s246 = smul.addr %s245, 4
      %s247 = scalar_lea.vmem %s0, %s246
      %p248 = pneg %p39
      %p249 = pneg %p36
      %p250 = pneg %p60
      %p251 = pneg %p57
      %p252 = pneg %p81
      %p253 = pneg %p78
      %p254 = pneg %p102
      %p255 = pneg %p99
      %p256 = pneg %p123
      %p257 = pneg %p120
      %p258 = pneg %p144
      %p259 = pneg %p141
      %p260 = pneg %p165
      %p261 = pneg %p162
      %p262 = pneg %p191
      %p263 = pneg %p188
      %p264 = scmp.lt.s32.totalorder %s18, 3
      %s265 = scalar_select %p264, %s18, 3
      %s266 = smul.addr %s265, 8
      %s267 = scalar_lea.vmem %s7, %s266
      %p268 = scmp.lt.s32.totalorder %s18, 3
      %s269 = scalar_select %p268, %s18, 3
      %s270 = smul.addr %s269, 10
      %s271 = smul.addr %s270, 4
      %s272 = scalar_lea.vmem %s0, %s271
      %p273 = scmp.lt.s32.totalorder %s18, 3
      %s274 = scalar_select %p273, %s18, 3
      %s275 = smul.addr %s274, 8
      %s276 = scalar_lea.vmem %s7, %s275
      %v278 = vld [vmem:[%s272] sm:$0xf]
      %v279 = vld [vmem:[%s272 + $0x4] sm:$0xf]
      %v280 = vld [vmem:[%s272 + $0x8] sm:$0xf]
      %v281 = vld [vmem:[%s272 + $0xc] sm:$0xf]
      %v282 = vld [vmem:[%s272 + $0x10] sm:$0xf]
      %v283 = vld [vmem:[%s272 + $0x14] sm:$0xf]
      %v284 = vld [vmem:[%s272 + $0x18] sm:$0xf]
      %v285 = vld [vmem:[%s272 + $0x1c] sm:$0xf]
      %v286 = vld [vmem:[%s272 + $0x20] sm:$0xf]
      %v287 = vld [vmem:[%s272 + $0x24] sm:$0xf]
      %v288 = vld [vmem:[%s1] sm:$0xf]
      %v289 = vld [vmem:[%s1 + $0x4] sm:$0xf]
      %v290 = vld [vmem:[%s1 + $0x8] sm:$0x3]
      %v291 = vld [vmem:[%s2] sm:$0x1]
      %v293 = vlaneseq
      %v294 = vshrl.u32 %v293, 7
      %v295 = vsub.s32 0, %v294
      %v296 = vrot.slane %v291, %v295
      %v308 = vunpack.c.l.b16 %v278
      %v309 = vunpack.c.l.b16 %v279
      %v310 = vunpack.c.l.b16 %v280
      %v311 = vunpack.c.l.b16 %v281
      %v312 = vunpack.c.l.b16 %v282
      %v313 = vunpack.c.l.b16 %v283
      %v314 = vunpack.c.l.b16 %v284
      %v315 = vunpack.c.l.b16 %v285
      %v316 = vunpack.c.l.b16 %v286
      %v317 = vunpack.c.l.b16 %v287
      %v318 = vpack.c.b16 %v309, %v308
      %v319 = vpack.c.b16 %v311, %v310
      %v320 = vpack.c.b16 %v313, %v312
      %v321 = vpack.c.b16 %v315, %v314
      %v322 = vpack.c.b16 %v317, %v316
      %v326 = vunpack.c.l.b16 %v288
      %v327 = vunpack.c.l.b16 %v289
      %v328 = vunpack.c.l.b16 %v290
      %v329 = vpack.c.b16 %v327, %v326
      %v330 = vpack.c.b16 %v328, %v328
      %vm332 = vcmask 162816
      %v334 = vsel %vm332, %v318, 0
      %v337 = vsel %vm332, %v319, 0
      %v340 = vsel %vm332, %v320, 0
      %v343 = vsel %vm332, %v321, 0
      %v346 = vsel %vm332, %v322, 0
      %vm348 = vcmask 1041408
      %v350 = vsel %vm348, %v330, 0
      %352 = vmatprep.subr.bf16.mxu0 0
      %353 = vmatpush1.bf16.msra.mxu0 %v329
      %354 = vmatprep.subr.bf16.mxu0 0
      %355 = vmatpush1.bf16.msra.mxu0 %v350
      %356 = vmatprep.subr.bf16.mxu0 0
      %357 = vmatpush1.bf16.msra.mxu0 0
      %358 = vmatprep.subr.bf16.mxu0 0
      %359 = vmatpush1.bf16.msra.mxu0 0
      %360 = vmatprep.subr.bf16.mxu0 0
      %361 = vmatpush1.bf16.msra.mxu0 0
      %362 = vmatprep.subr.bf16.mxu0 0
      %363 = vmatpush1.bf16.msra.mxu0 0
      %364 = vmatprep.subr.bf16.mxu0 0
      %365 = vmatpush1.bf16.msra.mxu0 0
      %366 = vmatprep.subr.bf16.mxu0 0
      %367 = vmatpush1.bf16.msra.mxu0 0
      %368 = vmatprep.subr.bf16.mxu0 0
      %369 = vmatpush1.bf16.msra.mxu0 0
      %370 = vmatprep.subr.bf16.mxu0 0
      %371 = vmatpush1.bf16.msra.mxu0 0
      %372 = vmatprep.subr.bf16.mxu0 0
      %373 = vmatpush1.bf16.msra.mxu0 0
      %374 = vmatprep.subr.bf16.mxu0 0
      %375 = vmatpush1.bf16.msra.mxu0 0
      %376 = vmatprep.subr.bf16.mxu0 0
      %377 = vmatpush1.bf16.msra.mxu0 0
      %378 = vmatprep.subr.bf16.mxu0 0
      %379 = vmatpush1.bf16.msra.mxu0 0
      %380 = vmatprep.subr.bf16.mxu0 0
      %381 = vmatpush1.bf16.msra.mxu0 0
      %382 = vmatprep.subr.bf16.mxu0 0
      %383 = vmatpush1.bf16.msra.mxu0 0
      %384 = vmatprep.mubr.bf16.mxu0 0
      %385 = vmatmul.mubr.bf16.gmra.mrb[0].mxu0 %v334
      %v386 = vpop.f32.mrb[0].mxu0
      %v387 = vadd.f32 %v296, %v386
      %v388 = vpop.f32.mrb[0].mxu0
      %v389 = vpop.f32.mrb[0].mxu0
      %v390 = vadd.f32 %v296, %v389
      %v391 = vpop.f32.mrb[0].mxu0
      %392 = vmatprep.mubr.bf16.mxu0 0
      %393 = vmatmul.mubr.bf16.gmra.mrb[0].mxu0 %v337
      %v394 = vpop.f32.mrb[0].mxu0
      %v395 = vadd.f32 %v296, %v394
      %v396 = vpop.f32.mrb[0].mxu0
      %v397 = vpop.f32.mrb[0].mxu0
      %v398 = vadd.f32 %v296, %v397
      %v399 = vpop.f32.mrb[0].mxu0
      %400 = vmatprep.mubr.bf16.mxu0 0
      %401 = vmatmul.mubr.bf16.gmra.mrb[0].mxu0 %v340
      %v402 = vpop.f32.mrb[0].mxu0
      %v403 = vadd.f32 %v296, %v402
      %v404 = vpop.f32.mrb[0].mxu0
      %v405 = vpop.f32.mrb[0].mxu0
      %v406 = vadd.f32 %v296, %v405
      %v407 = vpop.f32.mrb[0].mxu0
      %408 = vmatprep.mubr.bf16.mxu0 0
      %409 = vmatmul.mubr.bf16.gmra.mrb[0].mxu0 %v343
      %v410 = vpop.f32.mrb[0].mxu0
      %v411 = vadd.f32 %v296, %v410
      %v412 = vpop.f32.mrb[0].mxu0
      %v413 = vpop.f32.mrb[0].mxu0
      %v414 = vadd.f32 %v296, %v413
      %v415 = vpop.f32.mrb[0].mxu0
      %416 = vmatprep.mubr.bf16.mxu0 0
      %417 = vmatmul.mubr.bf16.gmra.mrb[0].mxu0 %v346
      %v418 = vpop.f32.mrb[0].mxu0
      %v419 = vadd.f32 %v296, %v418
      %v420 = vpop.f32.mrb[0].mxu0
      %v421 = vpop.f32.mrb[0].mxu0
      %v422 = vadd.f32 %v296, %v421
      %v423 = vpop.f32.mrb[0].mxu0
      %424 = vdwg.mxu0
      %v425 = vmax.f32 %v387, %v406
      %v426 = vmax.f32 %v390, %v411
      %v427 = vmax.f32 %v395, %v414
      %v428 = vmax.f32 %v398, %v419
      %v429 = vmax.f32 %v403, %v422
      %v430 = vmax.f32 %v425, 0.0
      %v431 = vmax.f32 %v426, 0.0
      %v432 = vmax.f32 %v427, 0.0
      %v433 = vmax.f32 %v428, 0.0
      %v434 = vmax.f32 %v429, 0.0
      %v435 = vlaneseq
      %v436 = vshrl.u32 %v435, 7
      %v437 = vadd.s32 %v436, 8
      %v438 = vadd.s32 %v436, 16
      %v439 = vadd.s32 %v436, 24
      %v440 = vadd.s32 %v436, 32
      %v441 = vcvt.s32.f32 %v436
      %v442 = vcvt.s32.f32 %v437
      %v443 = vcvt.s32.f32 %v438
      %v444 = vcvt.s32.f32 %v439
      %v445 = vcvt.s32.f32 %v440
      %v446 = vadd.f32 %v441, 0.5
      %v447 = vadd.f32 %v442, 0.5
      %v448 = vadd.f32 %v443, 0.5
      %v449 = vadd.f32 %v444, 0.5
      %v450 = vadd.f32 %v445, 0.5
      %v451 = vmul.f32 %v446, 0.05
      %v452 = vmul.f32 %v447, 0.05
      %v453 = vmul.f32 %v448, 0.05
      %v454 = vmul.f32 %v449, 0.05
      %v455 = vmul.f32 %v450, 0.05
      %v456 = vfloor.f32 %v451
      %v457 = vfloor.f32 %v452
      %v458 = vfloor.f32 %v453
      %v459 = vfloor.f32 %v454
      %v460 = vfloor.f32 %v455
      %v461 = vmul.f32 %v456, 20.0
      %v462 = vmul.f32 %v457, 20.0
      %v463 = vmul.f32 %v458, 20.0
      %v464 = vmul.f32 %v459, 20.0
      %v465 = vmul.f32 %v460, 20.0
      %v466 = vsub.f32 %v441, %v461
      %v467 = vsub.f32 %v442, %v462
      %v468 = vsub.f32 %v443, %v463
      %v469 = vsub.f32 %v444, %v464
      %v470 = vsub.f32 %v445, %v465
      %v471 = vrot.slane %v430, 6
      %v472 = vrot.slane %v431, 6
      %v473 = vrot.slane %v432, 6
      %v474 = vrot.slane %v433, 6
      %v475 = vrot.slane %v434, 6
      %vm476 = vcmp.lt.s32.totalorder %v436, 2
      %v477 = vsel %vm476, %v474, %v475
      %v478 = vsel %vm476, %v473, %v474
      %v479 = vsel %vm476, %v472, %v473
      %v480 = vsel %vm476, %v471, %v472
      %v481 = vsel %vm476, %v475, %v471
      %vm482 = vcmp.ge.f32.partialorder %v466, 1.5
      %vm483 = vcmp.ge.f32.partialorder %v467, 1.5
      %vm484 = vcmp.ge.f32.partialorder %v468, 1.5
      %vm485 = vcmp.ge.f32.partialorder %v469, 1.5
      %vm486 = vcmp.ge.f32.partialorder %v470, 1.5
      %v487 = vsel %vm482, %v481, 0.0
      %v488 = vsel %vm483, %v480, 0.0
      %v489 = vsel %vm484, %v479, 0.0
      %v490 = vsel %vm485, %v478, 0.0
      %v491 = vsel %vm486, %v477, 0.0
      %v492 = vpack.c.bf16 %v488, %v487
      %v493 = vpack.c.bf16 %v490, %v489
      %v494 = vpack.c.bf16 %v491, %v491
      %v495 = vrot.slane %v430, 7
      %v496 = vrot.slane %v431, 7
      %v497 = vrot.slane %v432, 7
      %v498 = vrot.slane %v433, 7
      %v499 = vrot.slane %v434, 7
      %vm500 = vcmp.lt.s32.totalorder %v436, 1
      %v501 = vsel %vm500, %v498, %v499
      %v502 = vsel %vm500, %v497, %v498
      %v503 = vsel %vm500, %v496, %v497
      %v504 = vsel %vm500, %v495, %v496
      %v505 = vsel %vm500, %v499, %v495
      %vm506 = vcmp.ge.f32.partialorder %v466, 0.5
      %vm507 = vcmp.ge.f32.partialorder %v467, 0.5
      %vm508 = vcmp.ge.f32.partialorder %v468, 0.5
      %vm509 = vcmp.ge.f32.partialorder %v469, 0.5
      %vm510 = vcmp.ge.f32.partialorder %v470, 0.5
      %v511 = vsel %vm506, %v505, 0.0
      %v512 = vsel %vm507, %v504, 0.0
      %v513 = vsel %vm508, %v503, 0.0
      %v514 = vsel %vm509, %v502, 0.0
      %v515 = vsel %vm510, %v501, 0.0
      %v516 = vpack.c.bf16 %v512, %v511
      %v517 = vpack.c.bf16 %v514, %v513
      %v518 = vpack.c.bf16 %v515, %v515
      %v519 = vpack.c.bf16 %v431, %v430
      %v520 = vpack.c.bf16 %v433, %v432
      %v521 = vpack.c.bf16 %v434, %v434
      %v522 = vrot.slane %v430, 1
      %v523 = vrot.slane %v431, 1
      %v524 = vrot.slane %v432, 1
      %v525 = vrot.slane %v433, 1
      %v526 = vrot.slane %v434, 1
      %vm527 = vcmp.lt.s32.totalorder %v436, 7
      %v528 = vsel %vm527, %v525, %v526
      %v529 = vsel %vm527, %v524, %v525
      %v530 = vsel %vm527, %v523, %v524
      %v531 = vsel %vm527, %v522, %v523
      %v532 = vsel %vm527, %v526, %v522
      %vm533 = vcmp.le.f32.partialorder %v466, 18.5
      %vm534 = vcmp.le.f32.partialorder %v467, 18.5
      %vm535 = vcmp.le.f32.partialorder %v468, 18.5
      %vm536 = vcmp.le.f32.partialorder %v469, 18.5
      %vm537 = vcmp.le.f32.partialorder %v470, 18.5
      %v538 = vsel %vm533, %v531, 0.0
      %v539 = vsel %vm534, %v530, 0.0
      %v540 = vsel %vm535, %v529, 0.0
      %v541 = vsel %vm536, %v528, 0.0
      %v542 = vsel %vm537, %v532, 0.0
      %v543 = vpack.c.bf16 %v539, %v538
      %v544 = vpack.c.bf16 %v541, %v540
      %v545 = vpack.c.bf16 %v542, %v542
      %v546 = vrot.slane %v430, 2
      %v547 = vrot.slane %v431, 2
      %v548 = vrot.slane %v432, 2
      %v549 = vrot.slane %v433, 2
      %v550 = vrot.slane %v434, 2
      %vm551 = vcmp.lt.s32.totalorder %v436, 6
      %v552 = vsel %vm551, %v549, %v550
      %v553 = vsel %vm551, %v548, %v549
      %v554 = vsel %vm551, %v547, %v548
      %v555 = vsel %vm551, %v546, %v547
      %v556 = vsel %vm551, %v550, %v546
      %vm557 = vcmp.le.f32.partialorder %v466, 17.5
      %vm558 = vcmp.le.f32.partialorder %v467, 17.5
      %vm559 = vcmp.le.f32.partialorder %v468, 17.5
      %vm560 = vcmp.le.f32.partialorder %v469, 17.5
      %vm561 = vcmp.le.f32.partialorder %v470, 17.5
      %v562 = vsel %vm557, %v555, 0.0
      %v563 = vsel %vm558, %v554, 0.0
      %v564 = vsel %vm559, %v553, 0.0
      %v565 = vsel %vm560, %v552, 0.0
      %v566 = vsel %vm561, %v556, 0.0
      %v567 = vpack.c.bf16 %v563, %v562
      %v568 = vpack.c.bf16 %v565, %v564
      %v569 = vpack.c.bf16 %v566, %v566
      %573 = vrot.lane.b32.xlu0 %v516, 32
      %v574 = vpop.permute.xlu0 %573
      %575 = vrot.lane.b32.xlu0 %v517, 32
      %v576 = vpop.permute.xlu0 %575
      %577 = vrot.lane.b32.xlu0 %v518, 32
      %v578 = vpop.permute.xlu0 %577
      %582 = vrot.lane.b32.xlu0 %v519, 64
      %v583 = vpop.permute.xlu0 %582
      %584 = vrot.lane.b32.xlu0 %v520, 64
      %v585 = vpop.permute.xlu0 %584
      %586 = vrot.lane.b32.xlu0 %v521, 64
      %v587 = vpop.permute.xlu0 %586
      %591 = vrot.lane.b32.xlu0 %v543, 96
      %v592 = vpop.permute.xlu0 %591
      %593 = vrot.lane.b32.xlu0 %v544, 96
      %v594 = vpop.permute.xlu0 %593
      %595 = vrot.lane.b32.xlu0 %v545, 96
      %v596 = vpop.permute.xlu0 %595
      %vm597 = vcmask 261120
      %v600 = vsel %vm597, %v492, %v574
      %v603 = vsel %vm597, %v493, %v576
      %v606 = vsel %vm597, %v494, %v578
      %vm607 = vcmask 523264
      %v609 = vsel %vm607, %v600, %v583
      %v611 = vsel %vm607, %v603, %v585
      %v613 = vsel %vm607, %v606, %v587
      %vm614 = vcmask 785408
      %v616 = vsel %vm614, %v609, %v592
      %v619 = vsel %vm614, %v611, %v594
      %v622 = vsel %vm614, %v613, %v596
      %v624 = vld [vmem:[%s3] sm:$0xf]
      %v625 = vld [vmem:[%s3 + $0x4] sm:$0xf]
      %v626 = vld [vmem:[%s3 + $0x8] sm:$0xf]
      %v627 = vld [vmem:[%s3 + $0xc] sm:$0xf]
      %v628 = vld [vmem:[%s3 + $0x10] sm:$0xf]
      %v629 = vld [vmem:[%s3 + $0x14] sm:$0xf]
      %v630 = vld [vmem:[%s3 + $0x18] sm:$0xf]
      %v631 = vld [vmem:[%s3 + $0x1c] sm:$0xf]
      %v632 = vld [vmem:[%s3 + $0x20] sm:$0xf]
      %v633 = vld [vmem:[%s3 + $0x24] sm:$0xf]
      %v634 = vld [vmem:[%s3 + $0x28] sm:$0xf]
      %v635 = vld [vmem:[%s3 + $0x2c] sm:$0xf]
      %v636 = vld [vmem:[%s3 + $0x30] sm:$0xf]
      %v637 = vld [vmem:[%s3 + $0x34] sm:$0xf]
      %v638 = vld [vmem:[%s3 + $0x38] sm:$0xf]
      %v639 = vld [vmem:[%s3 + $0x3c] sm:$0xf]
      %v640 = vld [vmem:[%s3 + $0x40] sm:$0xf]
      %v641 = vld [vmem:[%s3 + $0x44] sm:$0xf]
      %v642 = vld [vmem:[%s3 + $0x48] sm:$0xf]
      %v643 = vld [vmem:[%s3 + $0x4c] sm:$0xf]
      %v644 = vld [vmem:[%s4] sm:$0x1]
      %v646 = vlaneseq
      %v647 = vshrl.u32 %v646, 7
      %v648 = vsub.s32 0, %v647
      %v649 = vrot.slane %v644, %v648
      %v671 = vunpack.c.l.b16 %v624
      %v672 = vunpack.c.l.b16 %v625
      %v673 = vunpack.c.l.b16 %v626
      %v674 = vunpack.c.l.b16 %v627
      %v675 = vunpack.c.l.b16 %v628
      %v676 = vunpack.c.l.b16 %v629
      %v677 = vunpack.c.l.b16 %v630
      %v678 = vunpack.c.l.b16 %v631
      %v679 = vunpack.c.l.b16 %v632
      %v680 = vunpack.c.l.b16 %v633
      %v681 = vunpack.c.l.b16 %v634
      %v682 = vunpack.c.l.b16 %v635
      %v683 = vunpack.c.l.b16 %v636
      %v684 = vunpack.c.l.b16 %v637
      %v685 = vunpack.c.l.b16 %v638
      %v686 = vunpack.c.l.b16 %v639
      %v687 = vunpack.c.l.b16 %v640
      %v688 = vunpack.c.l.b16 %v641
      %v689 = vunpack.c.l.b16 %v642
      %v690 = vunpack.c.l.b16 %v643
      %v691 = vpack.c.b16 %v672, %v671
      %v692 = vpack.c.b16 %v674, %v673
      %v693 = vpack.c.b16 %v676, %v675
      %v694 = vpack.c.b16 %v678, %v677
      %v695 = vpack.c.b16 %v680, %v679
      %v696 = vpack.c.b16 %v682, %v681
      %v697 = vpack.c.b16 %v684, %v683
      %v698 = vpack.c.b16 %v686, %v685
      %v699 = vpack.c.b16 %v688, %v687
      %v700 = vpack.c.b16 %v690, %v689
      %v712 = vsel %vm597, %v567, 0
      %v715 = vsel %vm597, %v568, 0
      %v718 = vsel %vm597, %v569, 0
      %720 = vmatprep.subr.bf16.mxu0 0
      %721 = vmatpush1.bf16.msra.mxu0 %v691
      %722 = vmatprep.subr.bf16.mxu0 0
      %723 = vmatpush1.bf16.msra.mxu0 %v692
      %724 = vmatprep.subr.bf16.mxu0 0
      %725 = vmatpush1.bf16.msra.mxu0 %v693
      %726 = vmatprep.subr.bf16.mxu0 0
      %727 = vmatpush1.bf16.msra.mxu0 %v694
      %728 = vmatprep.subr.bf16.mxu0 0
      %729 = vmatpush1.bf16.msra.mxu0 %v695
      %730 = vmatprep.subr.bf16.mxu0 0
      %731 = vmatpush1.bf16.msra.mxu0 %v696
      %732 = vmatprep.subr.bf16.mxu0 0
      %733 = vmatpush1.bf16.msra.mxu0 %v697
      %734 = vmatprep.subr.bf16.mxu0 0
      %735 = vmatpush1.bf16.msra.mxu0 %v698
      %736 = vmatprep.subr.bf16.mxu0 0
      %737 = vmatpush1.bf16.msra.mxu0 %v699
      %738 = vmatprep.subr.bf16.mxu0 0
      %739 = vmatpush1.bf16.msra.mxu0 %v700
      %740 = vmatprep.subr.bf16.mxu0 0
      %741 = vmatpush1.bf16.msra.mxu0 0
      %742 = vmatprep.subr.bf16.mxu0 0
      %743 = vmatpush1.bf16.msra.mxu0 0
      %744 = vmatprep.subr.bf16.mxu0 0
      %745 = vmatpush1.bf16.msra.mxu0 0
      %746 = vmatprep.subr.bf16.mxu0 0
      %747 = vmatpush1.bf16.msra.mxu0 0
      %748 = vmatprep.subr.bf16.mxu0 0
      %749 = vmatpush1.bf16.msra.mxu0 0
      %750 = vmatprep.subr.bf16.mxu0 0
      %751 = vmatpush1.bf16.msra.mxu0 0
      %752 = vmatprep.mubr.bf16.mxu0 %v712
      %753 = vmatmul.mubr.bf16.gmra.mrb[0].mxu0 %v616
      %v754 = vpop.f32.mrb[0].mxu0
      %v755 = vadd.f32 %v649, %v754
      %v756 = vpop.f32.mrb[0].mxu0
      %v757 = vpop.f32.mrb[0].mxu0
      %v758 = vadd.f32 %v649, %v757
      %v759 = vpop.f32.mrb[0].mxu0
      %760 = vmatprep.mubr.bf16.mxu0 %v715
      %761 = vmatmul.mubr.bf16.gmra.mrb[0].mxu0 %v619
      %v762 = vpop.f32.mrb[0].mxu0
      %v763 = vadd.f32 %v649, %v762
      %v764 = vpop.f32.mrb[0].mxu0
      %v765 = vpop.f32.mrb[0].mxu0
      %v766 = vadd.f32 %v649, %v765
      %v767 = vpop.f32.mrb[0].mxu0
      %768 = vmatprep.mubr.bf16.mxu0 %v718
      %769 = vmatmul.mubr.bf16.gmra.mrb[0].mxu0 %v622
      %v770 = vpop.f32.mrb[0].mxu0
      %v771 = vadd.f32 %v649, %v770
      %v772 = vpop.f32.mrb[0].mxu0
      %v773 = vpop.f32.mrb[0].mxu0
      %v774 = vpop.f32.mrb[0].mxu0
      %775 = vdwg.mxu0
      %v776 = vmax.f32 %v755, 0.0
      %v777 = vmax.f32 %v758, 0.0
      %v778 = vmax.f32 %v763, 0.0
      %v779 = vmax.f32 %v766, 0.0
      %v780 = vmax.f32 %v771, 0.0
      %781 = vst.msk [vmem:[#allocation2] sm:$0xff] %vm597, %v776
      %782 = vst.msk [vmem:[#allocation2 + $0x8] sm:$0xff] %vm597, %v777
      %783 = vst.msk [vmem:[#allocation2 + $0x10] sm:$0xff] %vm597, %v778
      %784 = vst.msk [vmem:[#allocation2 + $0x18] sm:$0xff] %vm597, %v779
      %785 = vst.msk [vmem:[#allocation2 + $0x20] sm:$0xff] %vm597, %v780
      %v786 = vld [vmem:[#allocation2] ss:$5 sm:$0xff]
      %s787 = scalar_lea.vmem [#allocation2], 1
      %v788 = vld [vmem:[%s787] ss:$5 sm:$0xff]
      %v789 = vmax.f32 %v786, %v788
      %s790 = scalar_lea.vmem [#allocation2], 2
      %v791 = vld [vmem:[%s790] ss:$5 sm:$0xff]
      %v792 = vmax.f32 %v789, %v791
      %s793 = scalar_lea.vmem [#allocation2], 3
      %v794 = vld [vmem:[%s793] ss:$5 sm:$0xff]
      %v795 = vmax.f32 %v792, %v794
      %s796 = scalar_lea.vmem [#allocation2], 4
      %v797 = vld [vmem:[%s796] ss:$5 sm:$0xff]
      %v798 = vmax.f32 %v795, %v797
      %v799 = vrot.slane %v798, 1
      %v800 = vpack.c.bf16 %v798, %v798
      %v801 = vpack.c.bf16 %v799, %v799
      %803 = vrot.lane.b32.xlu0 %v801, 32
      %v804 = vpop.permute.xlu0 %803
      %v807 = vsel %vm597, %v800, %v804
      %v808 = vld [vmem:[%s5] sm:$0xf]
      %v809 = vld [vmem:[%s5 + $0x4] sm:$0xf]
      %v810 = vld [vmem:[%s5 + $0x8] sm:$0xf]
      %v811 = vld [vmem:[%s5 + $0xc] sm:$0xf]
      %v812 = vld [vmem:[%s5 + $0x10] sm:$0xf]
      %v813 = vld [vmem:[%s5 + $0x14] sm:$0xf]
      %v814 = vld [vmem:[%s5 + $0x18] sm:$0xf]
      %v815 = vld [vmem:[%s5 + $0x1c] sm:$0xf]
      %v816 = vld [vmem:[%s6] sm:$0x1]
      %v818 = vlaneseq
      %v819 = vshrl.u32 %v818, 7
      %v820 = vsub.s32 0, %v819
      %v821 = vrot.slane %v816, %v820
      %v831 = vunpack.c.l.b16 %v808
      %v832 = vunpack.c.l.b16 %v809
      %v833 = vunpack.c.l.b16 %v810
      %v834 = vunpack.c.l.b16 %v811
      %v835 = vunpack.c.l.b16 %v812
      %v836 = vunpack.c.l.b16 %v813
      %v837 = vunpack.c.l.b16 %v814
      %v838 = vunpack.c.l.b16 %v815
      %v839 = vpack.c.b16 %v832, %v831
      %v840 = vpack.c.b16 %v834, %v833
      %v841 = vpack.c.b16 %v836, %v835
      %v842 = vpack.c.b16 %v838, %v837
      %v847 = vsel %vm607, %v807, 0
      %849 = vmatprep.subr.bf16.mxu0 0
      %850 = vmatpush1.bf16.msra.mxu0 %v839
      %851 = vmatprep.subr.bf16.mxu0 0
      %852 = vmatpush1.bf16.msra.mxu0 %v840
      %853 = vmatprep.subr.bf16.mxu0 0
      %854 = vmatpush1.bf16.msra.mxu0 %v841
      %855 = vmatprep.subr.bf16.mxu0 0
      %856 = vmatpush1.bf16.msra.mxu0 %v842
      %857 = vmatprep.subr.bf16.mxu0 0
      %858 = vmatpush1.bf16.msra.mxu0 0
      %859 = vmatprep.subr.bf16.mxu0 0
      %860 = vmatpush1.bf16.msra.mxu0 0
      %861 = vmatprep.subr.bf16.mxu0 0
      %862 = vmatpush1.bf16.msra.mxu0 0
      %863 = vmatprep.subr.bf16.mxu0 0
      %864 = vmatpush1.bf16.msra.mxu0 0
      %865 = vmatprep.subr.bf16.mxu0 0
      %866 = vmatpush1.bf16.msra.mxu0 0
      %867 = vmatprep.subr.bf16.mxu0 0
      %868 = vmatpush1.bf16.msra.mxu0 0
      %869 = vmatprep.subr.bf16.mxu0 0
      %870 = vmatpush1.bf16.msra.mxu0 0
      %871 = vmatprep.subr.bf16.mxu0 0
      %872 = vmatpush1.bf16.msra.mxu0 0
      %873 = vmatprep.subr.bf16.mxu0 0
      %874 = vmatpush1.bf16.msra.mxu0 0
      %875 = vmatprep.subr.bf16.mxu0 0
      %876 = vmatpush1.bf16.msra.mxu0 0
      %877 = vmatprep.subr.bf16.mxu0 0
      %878 = vmatpush1.bf16.msra.mxu0 0
      %879 = vmatprep.subr.bf16.mxu0 0
      %880 = vmatpush1.bf16.msra.mxu0 0
      %881 = vmatprep.mubr.bf16.mxu0 0
      %882 = vmatmul.mubr.bf16.gmra.mrb[0].mxu0 %v847
      %v883 = vpop.f32.mrb[0].mxu0
      %v884 = vadd.f32 %v821, %v883
      %v885 = vpop.f32.mrb[0].mxu0
      %v886 = vpop.f32.mrb[0].mxu0
      %v887 = vpop.f32.mrb[0].mxu0
      %888 = vdwg.mxu0
      %889 = vst.msk [vmem:[%s276] sm:$0xff] %vm597, %v884
      %p890 = scmp.lt.s32.totalorder %s18, 3
      %s891 = scalar_select %p890, %s18, 3
      %s892 = smul.addr %s891, 8
      %s893 = scalar_lea.vmem %s7, %s892
      // Predicated region
      $region49: #{onehot_forward.1} parent=47 // pred_check
        %p894 = pneg %p188
      $region50: #{onehot_forward.1} parent=47 // pred_check_branch
        %896 = sbr.rel (%p894) target = $region52
      $region51: #{onehot_forward.1} parent=47 // pred_region
        _
      $region52: #{onehot_forward.1} parent=47 // pred_fallthru
        _
    $region48: #{onehot_forward.1} parent=5 // pred_fallthru
      _
    %p897 = scmp.le.s32.totalorder 2, %s13
    // Predicated region
    $region53: #{onehot_forward.1} parent=5 // pred_check
      %p898 = pneg %p897
    $region54: #{onehot_forward.1} parent=5 // pred_check_branch
      %900 = sbr.rel (%p898) target = $region56
    $region55: #{onehot_forward.1} parent=5 // pred_region
      %s901 = ssub.s32 %s13, 2
      // Predicated region
      $region57: #{onehot_forward.1} parent=55 // pred_check
        %p902 = pneg %p194
      $region58: #{onehot_forward.1} parent=55 // pred_check_branch
        %904 = sbr.rel (%p902) target = $region60
      $region59: #{onehot_forward.1} parent=55 // pred_region
        %p905 = scmp.lt.s32.totalorder %s19, 3
        %s906 = scalar_select %p905, %s19, 3
        %s907 = smul.addr %s906, 8
        %s908 = scalar_lea.vmem %s7, %s907
      $region60: #{onehot_forward.1} parent=55 // pred_fallthru
        _
    $region56: #{onehot_forward.1} parent=5 // pred_fallthru
      _
  $region6: #{onehot_forward.1} parent=0 // loop_footer
    %s17 = sadd.s32 1, %s13
  $region7: #{onehot_forward.1} parent=0 // loop_footer_branch
    %12 = sbr.rel target = $region3
  $region8: #{onehot_forward.1} parent=0 // loop_exit
    _

</llo_original>
